<compile_context>
chip_gen: v5e
topology: v5e:2x2
jax: 0.10.0
libtpu: 0.0.40
codegen_flags: <defaults>
</compile_context>

<pallas_src>
import functools

import jax
import jax.numpy as jnp
import numpy as np
from jax.experimental import pallas as pl
from jax.experimental.pallas import tpu as pltpu


def _round_up(n, m):
    return ((n + m - 1) // m) * m


def prepare_rnn_agent2_params(w_ih, w_hh, b_ih, b_hh, w_fc, b_fc):
    """One-time weight layout prep (call once; NOT on the per-step path).

    PyTorch shapes in: w_ih (H, I), w_hh (H, H), b_ih/b_hh (H,),
                       w_fc (O, H), b_fc (O,).
    Returns transposed, lane-dense zero-padded operands:
       wih_t (I, Hp), whh_t (Hp, Hp), b_sum (1, Hp), wfc_t (Hp, Op), bfc_p (1, Op)
    with Hp/Op = round_up(H/O, 128).  Zero padding is numerically inert:
    padded hidden lanes stay exactly 0 through tanh and both contractions.
    """
    H, _ = w_ih.shape
    O = w_fc.shape[0]
    Hp = _round_up(H, 128)
    Op = _round_up(O, 128)
    I = w_ih.shape[1]
    f32 = jnp.float32

    wih_t = jnp.zeros((I, Hp), f32).at[:, :H].set(w_ih.T.astype(f32))
    whh_t = jnp.zeros((Hp, Hp), f32).at[:H, :H].set(w_hh.T.astype(f32))
    b_sum = jnp.zeros((1, Hp), f32).at[0, :H].set((b_ih + b_hh).astype(f32))
    wfc_t = jnp.zeros((Hp, Op), f32).at[:H, :O].set(w_fc.T.astype(f32))
    bfc_p = jnp.zeros((1, Op), f32).at[0, :O].set(b_fc.astype(f32))
    return wih_t, whh_t, b_sum, wfc_t, bfc_p


@functools.partial(jax.jit, static_argnames=("out_dim",))
def rnn_agent2_forward(x, wih_t, whh_t, b_sum, wfc_t, bfc_p, *, out_dim):
    """h0 = 0; out = Linear(RNN(x)[:, -1, :]).  x: (B, T, I) float32.

    Weight operands must come from prepare_rnn_agent2_params (one-time prep).
    """
    B, T, I = x.shape
    Hp = wih_t.shape[1]
    Op = wfc_t.shape[1]
    B_pad = _round_up(B, 8)  # sublane-aligned batch tile

    # Input-side layout (unavoidably per-call; fused with the kernel under jit):
    # (B,T,I) -> zero-pad batch -> (T, B_pad, I) -> contiguous (T*B_pad, I) slab
    # so the projection is one GEMM and every per-step slice is a static,
    # sublane-aligned window.
    x_p = jnp.pad(x.astype(jnp.float32), ((0, B_pad - B), (0, 0), (0, 0)))
    x_tb = jnp.transpose(x_p, (1, 0, 2)).reshape(T * B_pad, I)

    def kernel(x_ref, wih_ref, whh_ref, b_ref, wfc_ref, bfc_ref, out_ref):
        # Input projection for ALL timesteps in one MXU GEMM (hoisted out of
        # the serial recurrence):  p[t*B_pad:(t+1)*B_pad] = x_t @ W_ih^T + b.
        p = (jnp.dot(x_ref[...], wih_ref[...],
                     preferred_element_type=jnp.float32) + b_ref[...])

        whh = whh_ref[...]                      # (Hp, Hp), reused every step
        h = jnp.zeros((B_pad, Hp), jnp.float32)

        # Serial recurrence, fully unrolled (T is small & static) so the LLO
        # scheduler sees the whole MXU->tanh chain.  For large T, switch to
        # lax.fori_loop(..., unroll=4/8) to bound code size / vreg live ranges.
        # NOTE: keeping W_hh stationary in the MXU across the chain
        # (pltpu.matmul_push_rhs / matmul_acc_lhs / matmul_pop) would remove
        # the per-step RHS re-staging; deferred for lowering robustness.
        # NOTE: padded batch rows (>= B) carry tanh(b_sum)-derived junk; every
        # op here is row-independent and the wrapper slices [:B], so benign.
        for t in range(T):
            p_t = p[t * B_pad:(t + 1) * B_pad, :]   # static, lane-dense (8, Hp)
            h = jnp.tanh(p_t + jnp.dot(h, whh,
                                       preferred_element_type=jnp.float32))

        # Fused final Linear; lane-dense (B_pad, Op) unmasked store.
        out_ref[...] = (jnp.dot(h, wfc_ref[...],
                                preferred_element_type=jnp.float32)
                        + bfc_ref[...])

    out_padded = pl.pallas_call(
        kernel,
        out_shape=jax.ShapeDtypeStruct((B_pad, Op), jnp.float32),
        in_specs=[pl.BlockSpec(memory_space=pltpu.MemorySpace.VMEM)] * 6,
        out_specs=pl.BlockSpec(memory_space=pltpu.MemorySpace.VMEM),
        # Scaling notes (not needed at B=2 / T=8):
        #  * larger B on v7x: add a leading batch-tile grid axis with
        #    dimension_semantics=("parallel",) to use both TensorCores.
        #  * large T*B*(I+H): time-chunk via pltpu.emit_pipeline and set
        #    pltpu.CompilerParams(vmem_limit_bytes=...) (v7x VMEM is 64 MiB).
    )(x_tb, wih_t, whh_t, b_sum, wfc_t, bfc_p)

    return out_padded[:B, :out_dim]


def rnn_agent2_reference(x, w_ih, w_hh, b_ih, b_hh, w_fc, b_fc):
    """Pure-JAX reference matching PyTorch RNN_Agent2.forward semantics."""
    B, T, I = x.shape
    H = w_ih.shape[0]
    h = jnp.zeros((B, H), jnp.float32)

    def step(h, x_t):
        h_new = jnp.tanh(x_t @ w_ih.T + b_ih + h @ w_hh.T + b_hh)
        return h_new, None

    h_last, _ = jax.lax.scan(step, h, jnp.transpose(x, (1, 0, 2)))
    return h_last @ w_fc.T + b_fc


if __name__ == "__main__":
    # Small shapes consistent with the module's forward:
    B, T, I, H, O = 2, 8, 16, 32, 4

    key = jax.random.PRNGKey(0)
    kx, k1, k2, k3, k4, k5, k6 = jax.random.split(key, 7)

    # Deterministic parameter init (PyTorch-style uniform(-1/sqrt(H), 1/sqrt(H))).
    bound = 1.0 / np.sqrt(H)
    x = jax.random.normal(kx, (B, T, I), jnp.float32)
    w_ih = jax.random.uniform(k1, (H, I), jnp.float32, -bound, bound)
    w_hh = jax.random.uniform(k2, (H, H), jnp.float32, -bound, bound)
    b_ih = jax.random.uniform(k3, (H,), jnp.float32, -bound, bound)
    b_hh = jax.random.uniform(k4, (H,), jnp.float32, -bound, bound)
    w_fc = jax.random.uniform(k5, (O, H), jnp.float32, -bound, bound)
    b_fc = jax.random.uniform(k6, (O,), jnp.float32, -bound, bound)

    # One-time weight layout prep (outside the per-call path).
    params = prepare_rnn_agent2_params(w_ih, w_hh, b_ih, b_hh, w_fc, b_fc)
    params = tuple(jax.block_until_ready(p) for p in params)

    out = rnn_agent2_forward(x, *params, out_dim=O)
    out = jax.block_until_ready(out)

    ref = rnn_agent2_reference(x, w_ih, w_hh, b_ih, b_hh, w_fc, b_fc)
    np.testing.assert_allclose(np.asarray(out), np.asarray(ref),
                               rtol=1e-5, atol=1e-5)

    print("KERNEL_OK")
</pallas_src>

<mosaic_0001>
module attributes {stable_mosaic.version = 11 : i64} {
  func.func @kernel(%arg0: memref<64x16xf32, #tpu.memory_space<vmem>>, %arg1: memref<16x128xf32, #tpu.memory_space<vmem>>, %arg2: memref<128x128xf32, #tpu.memory_space<vmem>>, %arg3: memref<1x128xf32, #tpu.memory_space<vmem>>, %arg4: memref<128x128xf32, #tpu.memory_space<vmem>>, %arg5: memref<1x128xf32, #tpu.memory_space<vmem>>, %arg6: memref<8x128xf32, #tpu.memory_space<vmem>>) attributes {dimension_semantics = [], scalar_prefetch = 0 : i64, scratch_operands = 0 : i64, tpu.core_type = #tpu.core_type<tc>} {
    %c0 = arith.constant 0 : index
    %c0_0 = arith.constant 0 : index
    %0 = vector.load %arg0[%c0, %c0_0] : memref<64x16xf32, #tpu.memory_space<vmem>>, vector<64x16xf32>
    %c0_1 = arith.constant 0 : index
    %c0_2 = arith.constant 0 : index
    %1 = vector.load %arg1[%c0_1, %c0_2] : memref<16x128xf32, #tpu.memory_space<vmem>>, vector<16x128xf32>
    %cst = arith.constant dense<0.000000e+00> : vector<64x128xf32>
    %2 = tpu.matmul %0, %1, %cst {dimension_numbers = #tpu.dot_dimension_numbers<[1], [0], [0], [1], [0, 0, 1, 1], [], []>} : vector<64x16xf32>, vector<16x128xf32>, vector<64x128xf32> -> vector<64x128xf32>
    %c0_3 = arith.constant 0 : index
    %c0_4 = arith.constant 0 : index
    %3 = vector.load %arg3[%c0_3, %c0_4] : memref<1x128xf32, #tpu.memory_space<vmem>>, vector<1x128xf32>
    %4 = vector.broadcast %3 : vector<1x128xf32> to vector<64x128xf32>
    %5 = arith.addf %2, %4 : vector<64x128xf32>
    %c0_5 = arith.constant 0 : index
    %c0_6 = arith.constant 0 : index
    %6 = vector.load %arg2[%c0_5, %c0_6] : memref<128x128xf32, #tpu.memory_space<vmem>>, vector<128x128xf32>
    %cst_7 = arith.constant 0.000000e+00 : f32
    %7 = vector.broadcast %cst_7 : f32 to vector<8x128xf32>
    %8 = vector.extract_strided_slice %5 {offsets = [0, 0], sizes = [8, 128], strides = [1, 1]} : vector<64x128xf32> to vector<8x128xf32>
    %cst_8 = arith.constant dense<0.000000e+00> : vector<8x128xf32>
    %9 = tpu.matmul %7, %6, %cst_8 {dimension_numbers = #tpu.dot_dimension_numbers<[1], [0], [0], [1], [0, 0, 1, 1], [], []>} : vector<8x128xf32>, vector<128x128xf32>, vector<8x128xf32> -> vector<8x128xf32>
    %10 = arith.addf %8, %9 : vector<8x128xf32>
    %11 = math.tanh %10 : vector<8x128xf32>
    %12 = vector.extract_strided_slice %5 {offsets = [8, 0], sizes = [8, 128], strides = [1, 1]} : vector<64x128xf32> to vector<8x128xf32>
    %cst_9 = arith.constant dense<0.000000e+00> : vector<8x128xf32>
    %13 = tpu.matmul %11, %6, %cst_9 {dimension_numbers = #tpu.dot_dimension_numbers<[1], [0], [0], [1], [0, 0, 1, 1], [], []>} : vector<8x128xf32>, vector<128x128xf32>, vector<8x128xf32> -> vector<8x128xf32>
    %14 = arith.addf %12, %13 : vector<8x128xf32>
    %15 = math.tanh %14 : vector<8x128xf32>
    %16 = vector.extract_strided_slice %5 {offsets = [16, 0], sizes = [8, 128], strides = [1, 1]} : vector<64x128xf32> to vector<8x128xf32>
    %cst_10 = arith.constant dense<0.000000e+00> : vector<8x128xf32>
    %17 = tpu.matmul %15, %6, %cst_10 {dimension_numbers = #tpu.dot_dimension_numbers<[1], [0], [0], [1], [0, 0, 1, 1], [], []>} : vector<8x128xf32>, vector<128x128xf32>, vector<8x128xf32> -> vector<8x128xf32>
    %18 = arith.addf %16, %17 : vector<8x128xf32>
    %19 = math.tanh %18 : vector<8x128xf32>
    %20 = vector.extract_strided_slice %5 {offsets = [24, 0], sizes = [8, 128], strides = [1, 1]} : vector<64x128xf32> to vector<8x128xf32>
    %cst_11 = arith.constant dense<0.000000e+00> : vector<8x128xf32>
    %21 = tpu.matmul %19, %6, %cst_11 {dimension_numbers = #tpu.dot_dimension_numbers<[1], [0], [0], [1], [0, 0, 1, 1], [], []>} : vector<8x128xf32>, vector<128x128xf32>, vector<8x128xf32> -> vector<8x128xf32>
    %22 = arith.addf %20, %21 : vector<8x128xf32>
    %23 = math.tanh %22 : vector<8x128xf32>
    %24 = vector.extract_strided_slice %5 {offsets = [32, 0], sizes = [8, 128], strides = [1, 1]} : vector<64x128xf32> to vector<8x128xf32>
    %cst_12 = arith.constant dense<0.000000e+00> : vector<8x128xf32>
    %25 = tpu.matmul %23, %6, %cst_12 {dimension_numbers = #tpu.dot_dimension_numbers<[1], [0], [0], [1], [0, 0, 1, 1], [], []>} : vector<8x128xf32>, vector<128x128xf32>, vector<8x128xf32> -> vector<8x128xf32>
    %26 = arith.addf %24, %25 : vector<8x128xf32>
    %27 = math.tanh %26 : vector<8x128xf32>
    %28 = vector.extract_strided_slice %5 {offsets = [40, 0], sizes = [8, 128], strides = [1, 1]} : vector<64x128xf32> to vector<8x128xf32>
    %cst_13 = arith.constant dense<0.000000e+00> : vector<8x128xf32>
    %29 = tpu.matmul %27, %6, %cst_13 {dimension_numbers = #tpu.dot_dimension_numbers<[1], [0], [0], [1], [0, 0, 1, 1], [], []>} : vector<8x128xf32>, vector<128x128xf32>, vector<8x128xf32> -> vector<8x128xf32>
    %30 = arith.addf %28, %29 : vector<8x128xf32>
    %31 = math.tanh %30 : vector<8x128xf32>
    %32 = vector.extract_strided_slice %5 {offsets = [48, 0], sizes = [8, 128], strides = [1, 1]} : vector<64x128xf32> to vector<8x128xf32>
    %cst_14 = arith.constant dense<0.000000e+00> : vector<8x128xf32>
    %33 = tpu.matmul %31, %6, %cst_14 {dimension_numbers = #tpu.dot_dimension_numbers<[1], [0], [0], [1], [0, 0, 1, 1], [], []>} : vector<8x128xf32>, vector<128x128xf32>, vector<8x128xf32> -> vector<8x128xf32>
    %34 = arith.addf %32, %33 : vector<8x128xf32>
    %35 = math.tanh %34 : vector<8x128xf32>
    %36 = vector.extract_strided_slice %5 {offsets = [56, 0], sizes = [8, 128], strides = [1, 1]} : vector<64x128xf32> to vector<8x128xf32>
    %cst_15 = arith.constant dense<0.000000e+00> : vector<8x128xf32>
    %37 = tpu.matmul %35, %6, %cst_15 {dimension_numbers = #tpu.dot_dimension_numbers<[1], [0], [0], [1], [0, 0, 1, 1], [], []>} : vector<8x128xf32>, vector<128x128xf32>, vector<8x128xf32> -> vector<8x128xf32>
    %38 = arith.addf %36, %37 : vector<8x128xf32>
    %39 = math.tanh %38 : vector<8x128xf32>
    %c0_16 = arith.constant 0 : index
    %c0_17 = arith.constant 0 : index
    %40 = vector.load %arg4[%c0_16, %c0_17] : memref<128x128xf32, #tpu.memory_space<vmem>>, vector<128x128xf32>
    %cst_18 = arith.constant dense<0.000000e+00> : vector<8x128xf32>
    %41 = tpu.matmul %39, %40, %cst_18 {dimension_numbers = #tpu.dot_dimension_numbers<[1], [0], [0], [1], [0, 0, 1, 1], [], []>} : vector<8x128xf32>, vector<128x128xf32>, vector<8x128xf32> -> vector<8x128xf32>
    %c0_19 = arith.constant 0 : index
    %c0_20 = arith.constant 0 : index
    %42 = vector.load %arg5[%c0_19, %c0_20] : memref<1x128xf32, #tpu.memory_space<vmem>>, vector<1x128xf32>
    %43 = vector.broadcast %42 : vector<1x128xf32> to vector<8x128xf32>
    %44 = arith.addf %41, %43 : vector<8x128xf32>
    %c0_21 = arith.constant 0 : index
    %c0_22 = arith.constant 0 : index
    %45 = vector.load %arg6[%c0_21, %c0_22] : memref<8x128xf32, #tpu.memory_space<vmem>>, vector<8x128xf32>
    tpu.vector_store %arg6[%c0_21, %c0_22], %44 {strides = array<i32>} : memref<8x128xf32, #tpu.memory_space<vmem>>, vector<8x128xf32>,
    return
  }
}

</mosaic_0001>

<llo_original>
// kernel: rnn_agent2_forward.1
$region0: #{rnn_agent2_forward.1}
  #allocation0 [shape = 'u32[]', space=smem, size = 0x4, offset = 0x4, fixed_abs, tag = 'smem constant byte address 0x4 - core index']
  #allocation1 [shape = 'u32[72,128]{1,0:T(1,128)}', space=vmem, size = 0x9000, scoped, tag = 'internal scratch']
  %s0 = inlined_call_operand.vmem [shape: f32[64,16], index: 0, kind: input, shape index: {}]
  %s1 = inlined_call_operand.vmem [shape: f32[16,128], index: 1, kind: input, shape index: {}]
  %s2 = inlined_call_operand.vmem [shape: f32[128,128], index: 2, kind: input, shape index: {}]
  %s3 = inlined_call_operand.vmem [shape: f32[1,128], index: 3, kind: input, shape index: {}]
  %s4 = inlined_call_operand.hbm [shape: f32[128,128], index: 4, kind: input, shape index: {}]
  %s5 = inlined_call_operand.vmem [shape: f32[1,128], index: 5, kind: input, shape index: {}]
  %s6 = inlined_call_operand.vmem [shape: f32[8,128], index: 6, kind: output, shape index: {}]
  %s7 = sld [smem:[#allocation0]]
  $region38: #{rnn_agent2_forward.1} parent=0
    _
  %s9 = ssub.s32 1, %s7
  %s10 = scalar_select 0, %s9, %s7
  $region1: #{rnn_agent2_forward.1} parent=0
    #allocation2 [shape = 'u8[65536]{0}', space=vmem, size = 0x10000, scoped, tag = 'input window, operand 4, single buffered']
    #allocation3 [shape = 's32[1]{0}', space=sflag, size = 0x4, scoped, tag = 'scoped memory for rnn_agent2_forward.1']
    %11 = vsyncpa [#allocation3], 0
    // Predicated region
    $region2: #{rnn_agent2_forward.1} parent=1 // pred_check
      _
    $region3: #{rnn_agent2_forward.1} parent=1 // pred_check_branch
      %13 = sbr.rel (0) target = $region5
    $region4: #{rnn_agent2_forward.1} parent=1 // pred_region
      _
    $region5: #{rnn_agent2_forward.1} parent=1 // pred_fallthru
      _
    // Predicated region
    $region6: #{rnn_agent2_forward.1} parent=1 // pred_check
      _
    $region7: #{rnn_agent2_forward.1} parent=1 // pred_check_branch
      %15 = sbr.rel (0) target = $region9
    $region8: #{rnn_agent2_forward.1} parent=1 // pred_region
      _
    $region9: #{rnn_agent2_forward.1} parent=1 // pred_fallthru
      _
    // Predicated region
    $region10: #{rnn_agent2_forward.1} parent=1 // pred_check
      _
    $region11: #{rnn_agent2_forward.1} parent=1 // pred_check_branch
      %17 = sbr.rel (0) target = $region13
    $region12: #{rnn_agent2_forward.1} parent=1 // pred_region
      _
    $region13: #{rnn_agent2_forward.1} parent=1 // pred_fallthru
      _
    // Predicated region
    $region14: #{rnn_agent2_forward.1} parent=1 // pred_check
      _
    $region15: #{rnn_agent2_forward.1} parent=1 // pred_check_branch
      %19 = sbr.rel (0) target = $region17
    $region16: #{rnn_agent2_forward.1} parent=1 // pred_region
      _
    $region17: #{rnn_agent2_forward.1} parent=1 // pred_fallthru
      _
    // Predicated region
    $region18: #{rnn_agent2_forward.1} parent=1 // pred_check
      _
    $region19: #{rnn_agent2_forward.1} parent=1 // pred_check_branch
      %21 = sbr.rel (0) target = $region21
    $region20: #{rnn_agent2_forward.1} parent=1 // pred_region
      %23 = vsyncadd [#allocation3], 0
      %s24 = sshll.u32 %s4, 4
      %s25 = int_to_ptr.hbm [resolvable:$true] %s24
      %s26 = sshll.u32 [#allocation2], 4
      %s27 = int_to_ptr.vmem [resolvable:$true] %s26
      %32 = dma.hbm_to_vmem [thread:$0]  %s25, 2048, %s27, [#allocation3], 128, 128, 8
    $region21: #{rnn_agent2_forward.1} parent=1 // pred_fallthru
      _
    // Predicated region
    $region22: #{rnn_agent2_forward.1} parent=1 // pred_check
      _
    $region23: #{rnn_agent2_forward.1} parent=1 // pred_check_branch
      %34 = sbr.rel (0) target = $region25
    $region24: #{rnn_agent2_forward.1} parent=1 // pred_region
      _
    $region25: #{rnn_agent2_forward.1} parent=1 // pred_fallthru
      _
    // Predicated region
    $region26: #{rnn_agent2_forward.1} parent=1 // pred_check
      _
    $region27: #{rnn_agent2_forward.1} parent=1 // pred_check_branch
      %36 = sbr.rel (0) target = $region29
    $region28: #{rnn_agent2_forward.1} parent=1 // pred_region
      %38 = dma.done [#allocation3], 2048
    $region29: #{rnn_agent2_forward.1} parent=1 // pred_fallthru
      _
    %v39 = vld [vmem:[%s0] sm:$0xff]
    %v40 = vld [vmem:[%s0 + $0x8] sm:$0xff]
    %v41 = vld [vmem:[%s0 + $0x10] sm:$0xff]
    %v42 = vld [vmem:[%s0 + $0x18] sm:$0xff]
    %v43 = vld [vmem:[%s0 + $0x20] sm:$0xff]
    %v44 = vld [vmem:[%s0 + $0x28] sm:$0xff]
    %v45 = vld [vmem:[%s0 + $0x30] sm:$0xff]
    %v46 = vld [vmem:[%s0 + $0x38] sm:$0xff]
    %v47 = vld [vmem:[%s1] sm:$0xff]
    %v48 = vld [vmem:[%s1 + $0x8] sm:$0xff]
    %v49 = vld [vmem:[%s3] sm:$0x1]
    %v51 = vperm.slane %v49, 0
    %vm53 = vcmask 130048
    %v55 = vsel %vm53, %v39, 0
    %v58 = vsel %vm53, %v40, 0
    %v61 = vsel %vm53, %v41, 0
    %v64 = vsel %vm53, %v42, 0
    %v67 = vsel %vm53, %v43, 0
    %v70 = vsel %vm53, %v44, 0
    %v73 = vsel %vm53, %v45, 0
    %v76 = vsel %vm53, %v46, 0
    %78 = vmatpush.msra.mxu0 0.0
    %79 = vmatpush.msra.mxu0 0.0
    %80 = vmatpush.msra.mxu0 0.0
    %81 = vmatpush.msra.mxu0 0.0
    %82 = vmatpush.msra.mxu0 0.0
    %83 = vmatpush.msra.mxu0 0.0
    %84 = vmatpush.msra.mxu0 0.0
    %85 = vmatpush.msra.mxu0 0.0
    %86 = vmatpush.msra.mxu0 0.0
    %87 = vmatpush.msra.mxu0 0.0
    %88 = vmatpush.msra.mxu0 0.0
    %89 = vmatpush.msra.mxu0 0.0
    %90 = vmatpush.msra.mxu0 0.0
    %91 = vmatpush.msra.mxu0 0.0
    %92 = vmatpush.msra.mxu0 %v48
    %93 = vmatpush.msra.mxu0 %v47
    %94 = vmatmul.f32.gmra.mxu0 %v55
    %v95 = vpop.f32.mrf.mxu0
    %v96 = vadd.f32 %v51, %v95
    %97 = vmatmul.f32.gmra.mxu0 %v58
    %v98 = vpop.f32.mrf.mxu0
    %v99 = vadd.f32 %v51, %v98
    %100 = vmatmul.f32.gmra.mxu0 %v61
    %v101 = vpop.f32.mrf.mxu0
    %v102 = vadd.f32 %v51, %v101
    %103 = vmatmul.f32.gmra.mxu0 %v64
    %v104 = vpop.f32.mrf.mxu0
    %v105 = vadd.f32 %v51, %v104
    %106 = vmatmul.f32.gmra.mxu0 %v67
    %v107 = vpop.f32.mrf.mxu0
    %v108 = vadd.f32 %v51, %v107
    %109 = vmatmul.f32.gmra.mxu0 %v70
    %v110 = vpop.f32.mrf.mxu0
    %v111 = vadd.f32 %v51, %v110
    %112 = vmatmul.f32.gmra.mxu0 %v73
    %v113 = vpop.f32.mrf.mxu0
    %v114 = vadd.f32 %v51, %v113
    %115 = vmatmul.f32.gmra.mxu0 %v76
    %v116 = vpop.f32.mrf.mxu0
    %v117 = vadd.f32 %v51, %v116
    %118 = vdwg.mxu0
    %v119 = vld [vmem:[%s2] sm:$0xff]
    %v120 = vld [vmem:[%s2 + $0x8] sm:$0xff]
    %v121 = vld [vmem:[%s2 + $0x10] sm:$0xff]
    %v122 = vld [vmem:[%s2 + $0x18] sm:$0xff]
    %v123 = vld [vmem:[%s2 + $0x20] sm:$0xff]
    %v124 = vld [vmem:[%s2 + $0x28] sm:$0xff]
    %v125 = vld [vmem:[%s2 + $0x30] sm:$0xff]
    %v126 = vld [vmem:[%s2 + $0x38] sm:$0xff]
    %v127 = vld [vmem:[%s2 + $0x40] sm:$0xff]
    %v128 = vld [vmem:[%s2 + $0x48] sm:$0xff]
    %v129 = vld [vmem:[%s2 + $0x50] sm:$0xff]
    %v130 = vld [vmem:[%s2 + $0x58] sm:$0xff]
    %v131 = vld [vmem:[%s2 + $0x60] sm:$0xff]
    %v132 = vld [vmem:[%s2 + $0x68] sm:$0xff]
    %v133 = vld [vmem:[%s2 + $0x70] sm:$0xff]
    %v134 = vld [vmem:[%s2 + $0x78] sm:$0xff]
    %135 = vmatpush.msra.mxu0 %v134
    %136 = vmatpush.msra.mxu0 %v133
    %137 = vmatpush.msra.mxu0 %v132
    %138 = vmatpush.msra.mxu0 %v131
    %139 = vmatpush.msra.mxu0 %v130
    %140 = vmatpush.msra.mxu0 %v129
    %141 = vmatpush.msra.mxu0 %v128
    %142 = vmatpush.msra.mxu0 %v127
    %143 = vmatpush.msra.mxu0 %v126
    %144 = vmatpush.msra.mxu0 %v125
    %145 = vmatpush.msra.mxu0 %v124
    %146 = vmatpush.msra.mxu0 %v123
    %147 = vmatpush.msra.mxu0 %v122
    %148 = vmatpush.msra.mxu0 %v121
    %149 = vmatpush.msra.mxu0 %v120
    %150 = vmatpush.msra.mxu0 %v119
    %151 = vmatmul.f32.gmra.mxu0 0.0
    %v152 = vpop.f32.mrf.mxu0
    %v153 = vadd.f32 0.0, %v152
    %154 = vdwg.mxu0
    %v155 = vadd.f32 %v96, %v153
    %v156 = vtanh.pop %v155
    %157 = vmatpush.msra.mxu0 %v134
    %158 = vmatpush.msra.mxu0 %v133
    %159 = vmatpush.msra.mxu0 %v132
    %160 = vmatpush.msra.mxu0 %v131
    %161 = vmatpush.msra.mxu0 %v130
    %162 = vmatpush.msra.mxu0 %v129
    %163 = vmatpush.msra.mxu0 %v128
    %164 = vmatpush.msra.mxu0 %v127
    %165 = vmatpush.msra.mxu0 %v126
    %166 = vmatpush.msra.mxu0 %v125
    %167 = vmatpush.msra.mxu0 %v124
    %168 = vmatpush.msra.mxu0 %v123
    %169 = vmatpush.msra.mxu0 %v122
    %170 = vmatpush.msra.mxu0 %v121
    %171 = vmatpush.msra.mxu0 %v120
    %172 = vmatpush.msra.mxu0 %v119
    %173 = vmatmul.f32.gmra.mxu0 %v156
    %v174 = vpop.f32.mrf.mxu0
    %v175 = vadd.f32 0.0, %v174
    %176 = vdwg.mxu0
    %v177 = vadd.f32 %v99, %v175
    %v178 = vtanh.pop %v177
    %179 = vmatpush.msra.mxu0 %v134
    %180 = vmatpush.msra.mxu0 %v133
    %181 = vmatpush.msra.mxu0 %v132
    %182 = vmatpush.msra.mxu0 %v131
    %183 = vmatpush.msra.mxu0 %v130
    %184 = vmatpush.msra.mxu0 %v129
    %185 = vmatpush.msra.mxu0 %v128
    %186 = vmatpush.msra.mxu0 %v127
    %187 = vmatpush.msra.mxu0 %v126
    %188 = vmatpush.msra.mxu0 %v125
    %189 = vmatpush.msra.mxu0 %v124
    %190 = vmatpush.msra.mxu0 %v123
    %191 = vmatpush.msra.mxu0 %v122
    %192 = vmatpush.msra.mxu0 %v121
    %193 = vmatpush.msra.mxu0 %v120
    %194 = vmatpush.msra.mxu0 %v119
    %195 = vmatmul.f32.gmra.mxu0 %v178
    %v196 = vpop.f32.mrf.mxu0
    %v197 = vadd.f32 0.0, %v196
    %198 = vdwg.mxu0
    %v199 = vadd.f32 %v102, %v197
    %v200 = vtanh.pop %v199
    %201 = vmatpush.msra.mxu0 %v134
    %202 = vmatpush.msra.mxu0 %v133
    %203 = vmatpush.msra.mxu0 %v132
    %204 = vmatpush.msra.mxu0 %v131
    %205 = vmatpush.msra.mxu0 %v130
    %206 = vmatpush.msra.mxu0 %v129
    %207 = vmatpush.msra.mxu0 %v128
    %208 = vmatpush.msra.mxu0 %v127
    %209 = vmatpush.msra.mxu0 %v126
    %210 = vmatpush.msra.mxu0 %v125
    %211 = vmatpush.msra.mxu0 %v124
    %212 = vmatpush.msra.mxu0 %v123
    %213 = vmatpush.msra.mxu0 %v122
    %214 = vmatpush.msra.mxu0 %v121
    %215 = vmatpush.msra.mxu0 %v120
    %216 = vmatpush.msra.mxu0 %v119
    %217 = vmatmul.f32.gmra.mxu0 %v200
    %v218 = vpop.f32.mrf.mxu0
    %v219 = vadd.f32 0.0, %v218
    %220 = vdwg.mxu0
    %v221 = vadd.f32 %v105, %v219
    %v222 = vtanh.pop %v221
    %223 = vmatpush.msra.mxu0 %v134
    %224 = vmatpush.msra.mxu0 %v133
    %225 = vmatpush.msra.mxu0 %v132
    %226 = vmatpush.msra.mxu0 %v131
    %227 = vmatpush.msra.mxu0 %v130
    %228 = vmatpush.msra.mxu0 %v129
    %229 = vmatpush.msra.mxu0 %v128
    %230 = vmatpush.msra.mxu0 %v127
    %231 = vmatpush.msra.mxu0 %v126
    %232 = vmatpush.msra.mxu0 %v125
    %233 = vmatpush.msra.mxu0 %v124
    %234 = vmatpush.msra.mxu0 %v123
    %235 = vmatpush.msra.mxu0 %v122
    %236 = vmatpush.msra.mxu0 %v121
    %237 = vmatpush.msra.mxu0 %v120
    %238 = vmatpush.msra.mxu0 %v119
    %239 = vmatmul.f32.gmra.mxu0 %v222
    %v240 = vpop.f32.mrf.mxu0
    %v241 = vadd.f32 0.0, %v240
    %242 = vdwg.mxu0
    %v243 = vadd.f32 %v108, %v241
    %v244 = vtanh.pop %v243
    %245 = vmatpush.msra.mxu0 %v134
    %246 = vmatpush.msra.mxu0 %v133
    %247 = vmatpush.msra.mxu0 %v132
    %248 = vmatpush.msra.mxu0 %v131
    %249 = vmatpush.msra.mxu0 %v130
    %250 = vmatpush.msra.mxu0 %v129
    %251 = vmatpush.msra.mxu0 %v128
    %252 = vmatpush.msra.mxu0 %v127
    %253 = vmatpush.msra.mxu0 %v126
    %254 = vmatpush.msra.mxu0 %v125
    %255 = vmatpush.msra.mxu0 %v124
    %256 = vmatpush.msra.mxu0 %v123
    %257 = vmatpush.msra.mxu0 %v122
    %258 = vmatpush.msra.mxu0 %v121
    %259 = vmatpush.msra.mxu0 %v120
    %260 = vmatpush.msra.mxu0 %v119
    %261 = vmatmul.f32.gmra.mxu0 %v244
    %v262 = vpop.f32.mrf.mxu0
    %v263 = vadd.f32 0.0, %v262
    %264 = vdwg.mxu0
    %v265 = vadd.f32 %v111, %v263
    %v266 = vtanh.pop %v265
    %267 = vmatpush.msra.mxu0 %v134
    %268 = vmatpush.msra.mxu0 %v133
    %269 = vmatpush.msra.mxu0 %v132
    %270 = vmatpush.msra.mxu0 %v131
    %271 = vmatpush.msra.mxu0 %v130
    %272 = vmatpush.msra.mxu0 %v129
    %273 = vmatpush.msra.mxu0 %v128
    %274 = vmatpush.msra.mxu0 %v127
    %275 = vmatpush.msra.mxu0 %v126
    %276 = vmatpush.msra.mxu0 %v125
    %277 = vmatpush.msra.mxu0 %v124
    %278 = vmatpush.msra.mxu0 %v123
    %279 = vmatpush.msra.mxu0 %v122
    %280 = vmatpush.msra.mxu0 %v121
    %281 = vmatpush.msra.mxu0 %v120
    %282 = vmatpush.msra.mxu0 %v119
    %283 = vmatmul.f32.gmra.mxu0 %v266
    %v284 = vpop.f32.mrf.mxu0
    %v285 = vadd.f32 0.0, %v284
    %286 = vdwg.mxu0
    %v287 = vadd.f32 %v114, %v285
    %v288 = vtanh.pop %v287
    %289 = vmatpush.msra.mxu0 %v134
    %290 = vmatpush.msra.mxu0 %v133
    %291 = vmatpush.msra.mxu0 %v132
    %292 = vmatpush.msra.mxu0 %v131
    %293 = vmatpush.msra.mxu0 %v130
    %294 = vmatpush.msra.mxu0 %v129
    %295 = vmatpush.msra.mxu0 %v128
    %296 = vmatpush.msra.mxu0 %v127
    %297 = vmatpush.msra.mxu0 %v126
    %298 = vmatpush.msra.mxu0 %v125
    %299 = vmatpush.msra.mxu0 %v124
    %300 = vmatpush.msra.mxu0 %v123
    %301 = vmatpush.msra.mxu0 %v122
    %302 = vmatpush.msra.mxu0 %v121
    %303 = vmatpush.msra.mxu0 %v120
    %304 = vmatpush.msra.mxu0 %v119
    %305 = vmatmul.f32.gmra.mxu0 %v288
    %v306 = vpop.f32.mrf.mxu0
    %v307 = vadd.f32 0.0, %v306
    %308 = vdwg.mxu0
    %v309 = vadd.f32 %v117, %v307
    %v310 = vtanh.pop %v309
    %v311 = vld [vmem:[#allocation2] sm:$0xff]
    %v312 = vld [vmem:[#allocation2 + $0x8] sm:$0xff]
    %v313 = vld [vmem:[#allocation2 + $0x10] sm:$0xff]
    %v314 = vld [vmem:[#allocation2 + $0x18] sm:$0xff]
    %v315 = vld [vmem:[#allocation2 + $0x20] sm:$0xff]
    %v316 = vld [vmem:[#allocation2 + $0x28] sm:$0xff]
    %v317 = vld [vmem:[#allocation2 + $0x30] sm:$0xff]
    %v318 = vld [vmem:[#allocation2 + $0x38] sm:$0xff]
    %v319 = vld [vmem:[#allocation2 + $0x40] sm:$0xff]
    %v320 = vld [vmem:[#allocation2 + $0x48] sm:$0xff]
    %v321 = vld [vmem:[#allocation2 + $0x50] sm:$0xff]
    %v322 = vld [vmem:[#allocation2 + $0x58] sm:$0xff]
    %v323 = vld [vmem:[#allocation2 + $0x60] sm:$0xff]
    %v324 = vld [vmem:[#allocation2 + $0x68] sm:$0xff]
    %v325 = vld [vmem:[#allocation2 + $0x70] sm:$0xff]
    %v326 = vld [vmem:[#allocation2 + $0x78] sm:$0xff]
    %v327 = vld [vmem:[%s5] sm:$0x1]
    %v329 = vperm.slane %v327, 0
    %331 = vmatpush.msra.mxu0 %v326
    %332 = vmatpush.msra.mxu0 %v325
    %333 = vmatpush.msra.mxu0 %v324
    %334 = vmatpush.msra.mxu0 %v323
    %335 = vmatpush.msra.mxu0 %v322
    %336 = vmatpush.msra.mxu0 %v321
    %337 = vmatpush.msra.mxu0 %v320
    %338 = vmatpush.msra.mxu0 %v319
    %339 = vmatpush.msra.mxu0 %v318
    %340 = vmatpush.msra.mxu0 %v317
    %341 = vmatpush.msra.mxu0 %v316
    %342 = vmatpush.msra.mxu0 %v315
    %343 = vmatpush.msra.mxu0 %v314
    %344 = vmatpush.msra.mxu0 %v313
    %345 = vmatpush.msra.mxu0 %v312
    %346 = vmatpush.msra.mxu0 %v311
    %347 = vmatmul.f32.gmra.mxu0 %v310
    %v348 = vpop.f32.mrf.mxu0
    %v349 = vadd.f32 %v329, %v348
    %350 = vdwg.mxu0
    %351 = vst [vmem:[%s6] sm:$0xff] %v349
    // Predicated region
    $region30: #{rnn_agent2_forward.1} parent=1 // pred_check
      _
    $region31: #{rnn_agent2_forward.1} parent=1 // pred_check_branch
      %353 = sbr.rel (0) target = $region33
    $region32: #{rnn_agent2_forward.1} parent=1 // pred_region
      _
    $region33: #{rnn_agent2_forward.1} parent=1 // pred_fallthru
      _
    // Predicated region
    $region34: #{rnn_agent2_forward.1} parent=1 // pred_check
      _
    $region35: #{rnn_agent2_forward.1} parent=1 // pred_check_branch
      %355 = sbr.rel (0) target = $region37
    $region36: #{rnn_agent2_forward.1} parent=1 // pred_region
      _
    $region37: #{rnn_agent2_forward.1} parent=1 // pred_fallthru
      _
    %356 = vsyncpa [#allocation3], 1

</llo_original>
